<compile_context>
chip_gen: v7x
topology: tpu7x:2x2x1
jax: 0.10.0
libtpu: 0.0.40
codegen_flags: <defaults>
</compile_context>

<pallas_src>
import math

import jax
import jax.numpy as jnp
from jax.experimental import pallas as pl
from jax.experimental.pallas import tpu as pltpu


# --------------------------------------------------------------------------
# Pallas kernel: fused windowed-DFT + log-power + MLP VAD head
#   frames_ref : (F, TILE_M)  bf16   frames, frame index on the lane axis
#   basis_ref  : (2K, F)      bf16   Hann-windowed [cos | -sin] DFT basis^T
#   w1_ref     : (H, K)       bf16   Linear1 weight^T
#   b1_ref     : (H, 1)       f32
#   w2_ref     : (H, 1)       f32
#   b2_ref     : (1,)         f32    (SMEM scalar)
#   o_ref      : (1, TILE_M)  f32    per-frame VAD probability (lane-dense)
# --------------------------------------------------------------------------
def vad_kernel(frames_ref, basis_ref, w1_ref, b1_ref, w2_ref, b2_ref, o_ref):
    x = frames_ref[...]                                             # (F, Tm) bf16
    k_bins = basis_ref.shape[0] // 2                                # static

    # --- spectogram: single fused DFT matmul (MXU, bf16 in / f32 acc) ---
    spec = jnp.dot(basis_ref[...], x,
                   preferred_element_type=jnp.float32)              # (2K, Tm) f32
    re = spec[:k_bins, :]                                           # aligned sublane slice
    im = spec[k_bins:, :]
    log_spec = jnp.log(re * re + im * im + 1e-6)                    # (K, Tm) f32

    # --- inner: Linear -> ReLU -> (hidden->1) VPU reduction -> sigmoid ---
    h = jnp.dot(w1_ref[...], log_spec.astype(jnp.bfloat16),
                preferred_element_type=jnp.float32) + b1_ref[...]   # (H, Tm) f32
    h = jnp.maximum(h, 0.0)
    logits = jnp.sum(h * w2_ref[...], axis=0, keepdims=True) + b2_ref[0]   # (1, Tm)

    # --- .to(torch.float32) ---
    o_ref[...] = jax.nn.sigmoid(logits).astype(jnp.float32)


def onnx_super_vad(audio, params, *, frame_len, hop, tile_m=1024):
    """audio: (B, S) float32 -> VAD probs (B, T) float32."""
    B, S = audio.shape
    F = frame_len
    T = (S - F) // hop + 1
    M = B * T
    K = params["dft_re"].shape[1]
    H = params["w1"].shape[1]

    # ---- parameter prep: fold Hann window into DFT basis, transpose, bf16 ----
    window = 0.5 - 0.5 * jnp.cos(
        2.0 * jnp.pi * jnp.arange(F, dtype=jnp.float32) / F)            # Hann (periodic)
    basis = jnp.concatenate([params["dft_re"], params["dft_im"]], axis=1)   # (F, 2K)
    basis_t = (window[:, None] * basis).T.astype(jnp.bfloat16)             # (2K, F)
    w1_t = params["w1"].T.astype(jnp.bfloat16)                             # (H, K)
    b1_c = params["b1"].reshape(H, 1).astype(jnp.float32)                  # (H, 1)
    w2_c = params["w2"].reshape(H, 1).astype(jnp.float32)                  # (H, 1)
    b2_c = params["b2"].reshape(1).astype(jnp.float32)                     # (1,) -> SMEM

    # ---- framing (indexing only; window already folded into the basis) ----
    idx = hop * jnp.arange(T)[:, None] + jnp.arange(F)[None, :]            # (T, F)
    frames = audio[:, idx].reshape(M, F).astype(jnp.float32)               # (M, F)

    # ---- tile the frame axis (lane axis); pad M to a multiple of tile_m ----
    m_round = ((M + 127) // 128) * 128
    tile_m = max(128, min((tile_m // 128) * 128, m_round))
    num_tiles = (M + tile_m - 1) // tile_m
    m_pad = num_tiles * tile_m
    frames_t = jnp.pad(frames.T.astype(jnp.bfloat16),
                       ((0, 0), (0, m_pad - M)))                           # (F, m_pad)

    cost = pl.CostEstimate(
        flops=(2 * m_pad * F * 2 * K        # fused DFT matmul
               + 3 * m_pad * K              # power
               + 2 * m_pad * K * H          # Linear1
               + 5 * m_pad * H),            # bias/ReLU/head mul+reduce
        transcendentals=m_pad * K + m_pad,  # log + sigmoid
        bytes_accessed=(frames_t.size * 2 + basis_t.size * 2 + w1_t.size * 2
                        + (b1_c.size + w2_c.size + b2_c.size) * 4
                        + m_pad * 4),
    )

    out = pl.pallas_call(
        vad_kernel,
        out_shape=jax.ShapeDtypeStruct((1, m_pad), jnp.float32),
        grid=(num_tiles,),
        in_specs=[
            pl.BlockSpec((F, tile_m), lambda i: (0, i)),      # frames: streamed per tile
            pl.BlockSpec((2 * K, F), lambda i: (0, 0)),       # windowed DFT basis: resident
            pl.BlockSpec((H, K), lambda i: (0, 0)),           # w1^T: resident
            pl.BlockSpec((H, 1), lambda i: (0, 0)),           # b1
            pl.BlockSpec((H, 1), lambda i: (0, 0)),           # w2
            pl.BlockSpec(memory_space=pltpu.MemorySpace.SMEM),  # b2 scalar
        ],
        out_specs=pl.BlockSpec((1, tile_m), lambda i: (0, i)),   # lane-dense output
        compiler_params=pltpu.CompilerParams(
            dimension_semantics=("parallel",)),
        cost_estimate=cost,
    )(frames_t, basis_t, w1_t, b1_c, w2_c, b2_c)

    return out[0, :M].reshape(B, T)


# --------------------------------------------------------------------------
# Pure-JAX f32 reference (same math, untransposed / unfused) for validation
# --------------------------------------------------------------------------
def vad_reference(audio, params, *, frame_len, hop):
    B, S = audio.shape
    F = frame_len
    T = (S - F) // hop + 1
    idx = hop * jnp.arange(T)[:, None] + jnp.arange(F)[None, :]
    frames = audio[:, idx].reshape(B * T, F).astype(jnp.float32)
    window = 0.5 - 0.5 * jnp.cos(
        2.0 * jnp.pi * jnp.arange(F, dtype=jnp.float32) / F)
    fw = frames * window
    re = fw @ params["dft_re"]
    im = fw @ params["dft_im"]
    log_spec = jnp.log(re * re + im * im + 1e-6)
    h = jnp.maximum(log_spec @ params["w1"] + params["b1"], 0.0)
    logits = h @ params["w2"] + params["b2"]
    return jax.nn.sigmoid(logits).reshape(B, T).astype(jnp.float32)


# --------------------------------------------------------------------------
# Deterministic parameter construction (synthetic; no checkpoint load)
# --------------------------------------------------------------------------
def make_params(key, frame_len, n_freq, hidden):
    n = jnp.arange(frame_len, dtype=jnp.float32)[:, None]        # (F, 1)
    k = jnp.arange(n_freq, dtype=jnp.float32)[None, :]           # (1, K)
    ang = 2.0 * jnp.pi * n * k / frame_len
    dft_re = jnp.cos(ang).astype(jnp.float32)                    # (F, K)
    dft_im = -jnp.sin(ang).astype(jnp.float32)                   # (F, K)

    k1, k2 = jax.random.split(key)
    w1 = (jax.random.normal(k1, (n_freq, hidden), jnp.float32)
          / math.sqrt(n_freq))
    b1 = jnp.zeros((1, hidden), jnp.float32)
    w2 = (jax.random.normal(k2, (hidden, 1), jnp.float32)
          / math.sqrt(hidden))
    b2 = jnp.zeros((1, 1), jnp.float32)
    return dict(dft_re=dft_re, dft_im=dft_im, w1=w1, b1=b1, w2=w2, b2=b2)


if __name__ == "__main__":
    # Small shapes: batch=2, frame_len=128, hop=64, 8 frames, 64 freq bins,
    # hidden=32.
    B = 2
    FRAME_LEN = 128
    HOP = 64
    T = 8
    N_FREQ = 64
    HIDDEN = 32
    S = HOP * (T - 1) + FRAME_LEN                                # 576 samples

    key = jax.random.PRNGKey(0)
    k_audio, k_params = jax.random.split(key)
    audio = jax.random.normal(k_audio, (B, S), jnp.float32)
    params = make_params(k_params, FRAME_LEN, N_FREQ, HIDDEN)

    out = onnx_super_vad(audio, params, frame_len=FRAME_LEN, hop=HOP)
    out = jax.block_until_ready(out)

    ref = vad_reference(audio, params, frame_len=FRAME_LEN, hop=HOP)

    assert out.shape == (B, T), out.shape
    assert out.dtype == jnp.float32, out.dtype
    assert bool(jnp.all(jnp.isfinite(out)))
    # bf16 matmul inputs with f32 accumulation: generous but meaningful bound
    assert bool(jnp.max(jnp.abs(out - ref)) < 0.08), float(jnp.max(jnp.abs(out - ref)))
    print("KERNEL_OK")
</pallas_src>

<mosaic_0001>
module attributes {stable_mosaic.version = 11 : i64} {
  func.func @vad_kernel(%arg0: i32, %arg1: memref<128x128xbf16, #tpu.memory_space<vmem>>, %arg2: memref<128x128xbf16, #tpu.memory_space<vmem>>, %arg3: memref<32x64xbf16, #tpu.memory_space<vmem>>, %arg4: memref<32x1xf32, #tpu.memory_space<vmem>>, %arg5: memref<32x1xf32, #tpu.memory_space<vmem>>, %arg6: memref<1xf32, #tpu.memory_space<smem>>, %arg7: memref<1x128xf32, #tpu.memory_space<vmem>>) attributes {dimension_semantics = [#tpu.dimension_semantics<parallel>], iteration_bounds = array<i64: 1>, scalar_prefetch = 0 : i64, scratch_operands = 0 : i64, tpu.core_type = #tpu.core_type<tc>, window_params = [{transform_indices = @transform_0, window_bounds = array<i64: 128, 128>}, {pipeline_mode = #tpu.pipeline_mode<synchronous>, transform_indices = @transform_1, window_bounds = array<i64: 128, 128>}, {pipeline_mode = #tpu.pipeline_mode<synchronous>, transform_indices = @transform_2, window_bounds = array<i64: 32, 64>}, {pipeline_mode = #tpu.pipeline_mode<synchronous>, transform_indices = @transform_3, window_bounds = array<i64: 32, 1>}, {pipeline_mode = #tpu.pipeline_mode<synchronous>, transform_indices = @transform_4, window_bounds = array<i64: 32, 1>}, {transform_indices = @transform_5, window_bounds = array<i64: 1>}, {transform_indices = @transform_6, window_bounds = array<i64: 1, 128>}]} {
    %c0 = arith.constant 0 : index
    %c0_0 = arith.constant 0 : index
    %0 = vector.load %arg1[%c0, %c0_0] : memref<128x128xbf16, #tpu.memory_space<vmem>>, vector<128x128xbf16>
    %c0_1 = arith.constant 0 : index
    %c0_2 = arith.constant 0 : index
    %1 = vector.load %arg2[%c0_1, %c0_2] : memref<128x128xbf16, #tpu.memory_space<vmem>>, vector<128x128xbf16>
    %cst = arith.constant dense<0.000000e+00> : vector<128x128xf32>
    %2 = tpu.matmul %1, %0, %cst {dimension_numbers = #tpu.dot_dimension_numbers<[1], [0], [0], [1], [0, 0, 1, 1], [], []>} : vector<128x128xbf16>, vector<128x128xbf16>, vector<128x128xf32> -> vector<128x128xf32>
    %3 = vector.extract_strided_slice %2 {offsets = [0, 0], sizes = [64, 128], strides = [1, 1]} : vector<128x128xf32> to vector<64x128xf32>
    %4 = vector.extract_strided_slice %2 {offsets = [64, 0], sizes = [64, 128], strides = [1, 1]} : vector<128x128xf32> to vector<64x128xf32>
    %5 = arith.mulf %3, %3 : vector<64x128xf32>
    %6 = arith.mulf %4, %4 : vector<64x128xf32>
    %7 = arith.addf %5, %6 : vector<64x128xf32>
    %cst_3 = arith.constant 9.99999997E-7 : f32
    %8 = vector.broadcast %cst_3 : f32 to vector<64x128xf32>
    %9 = arith.addf %7, %8 : vector<64x128xf32>
    %10 = math.log %9 : vector<64x128xf32>
    %c0_4 = arith.constant 0 : index
    %c0_5 = arith.constant 0 : index
    %11 = vector.load %arg3[%c0_4, %c0_5] : memref<32x64xbf16, #tpu.memory_space<vmem>>, vector<32x64xbf16>
    %12 = arith.truncf %10 : vector<64x128xf32> to vector<64x128xbf16>
    %cst_6 = arith.constant dense<0.000000e+00> : vector<32x128xf32>
    %13 = tpu.matmul %11, %12, %cst_6 {dimension_numbers = #tpu.dot_dimension_numbers<[1], [0], [0], [1], [0, 0, 1, 1], [], []>} : vector<32x64xbf16>, vector<64x128xbf16>, vector<32x128xf32> -> vector<32x128xf32>
    %c0_7 = arith.constant 0 : index
    %c0_8 = arith.constant 0 : index
    %14 = vector.load %arg4[%c0_7, %c0_8] : memref<32x1xf32, #tpu.memory_space<vmem>>, vector<32x1xf32>
    %15 = vector.broadcast %14 : vector<32x1xf32> to vector<32x128xf32>
    %16 = arith.addf %13, %15 : vector<32x128xf32>
    %cst_9 = arith.constant 0.000000e+00 : f32
    %17 = vector.broadcast %cst_9 : f32 to vector<32x128xf32>
    %18 = arith.maximumf %16, %17 : vector<32x128xf32>
    %c0_10 = arith.constant 0 : index
    %c0_11 = arith.constant 0 : index
    %19 = vector.load %arg5[%c0_10, %c0_11] : memref<32x1xf32, #tpu.memory_space<vmem>>, vector<32x1xf32>
    %20 = vector.broadcast %19 : vector<32x1xf32> to vector<32x128xf32>
    %21 = arith.mulf %18, %20 : vector<32x128xf32>
    %cst_12 = arith.constant dense<0.000000e+00> : vector<128xf32>
    %22 = vector.multi_reduction <add>, %21, %cst_12 [0] : vector<32x128xf32> to vector<128xf32>
    %23 = vector.shape_cast %22 : vector<128xf32> to vector<1x128xf32>
    %c0_13 = arith.constant 0 : index
    %24 = memref.load %arg6[%c0_13] : memref<1xf32, #tpu.memory_space<smem>>
    %25 = vector.broadcast %24 : f32 to vector<1x128xf32>
    %26 = arith.addf %23, %25 : vector<1x128xf32>
    %27 = arith.negf %26 : vector<1x128xf32>
    %28 = math.exp %27 : vector<1x128xf32>
    %cst_14 = arith.constant 1.000000e+00 : f32
    %29 = vector.broadcast %cst_14 : f32 to vector<1x128xf32>
    %30 = arith.addf %29, %28 : vector<1x128xf32>
    %31 = arith.divf %29, %30 : vector<1x128xf32>
    %c0_15 = arith.constant 0 : index
    %c0_16 = arith.constant 0 : index
    %32 = vector.load %arg7[%c0_15, %c0_16] : memref<1x128xf32, #tpu.memory_space<vmem>>, vector<1x128xf32>
    tpu.vector_store %arg7[%c0_15, %c0_16], %31 {strides = array<i32>} : memref<1x128xf32, #tpu.memory_space<vmem>>, vector<1x128xf32>,
    return
  }
  func.func @transform_0(%arg0: i32) -> (i32, i32) {
    %c0_i32 = arith.constant 0 : i32
    %c0_i32_0 = arith.constant 0 : i32
    return %c0_i32, %arg0 : i32, i32
  }
  func.func @transform_1(%arg0: i32) -> (i32, i32) {
    %c0_i32 = arith.constant 0 : i32
    %c0_i32_0 = arith.constant 0 : i32
    %c0_i32_1 = arith.constant 0 : i32
    return %c0_i32, %c0_i32_0 : i32, i32
  }
  func.func @transform_2(%arg0: i32) -> (i32, i32) {
    %c0_i32 = arith.constant 0 : i32
    %c0_i32_0 = arith.constant 0 : i32
    %c0_i32_1 = arith.constant 0 : i32
    return %c0_i32, %c0_i32_0 : i32, i32
  }
  func.func @transform_3(%arg0: i32) -> (i32, i32) {
    %c0_i32 = arith.constant 0 : i32
    %c0_i32_0 = arith.constant 0 : i32
    %c0_i32_1 = arith.constant 0 : i32
    return %c0_i32, %c0_i32_0 : i32, i32
  }
  func.func @transform_4(%arg0: i32) -> (i32, i32) {
    %c0_i32 = arith.constant 0 : i32
    %c0_i32_0 = arith.constant 0 : i32
    %c0_i32_1 = arith.constant 0 : i32
    return %c0_i32, %c0_i32_0 : i32, i32
  }
  func.func @transform_5(%arg0: i32) -> i32 {
    %c0_i32 = arith.constant 0 : i32
    %c0_i32_0 = arith.constant 0 : i32
    return %c0_i32 : i32
  }
  func.func @transform_6(%arg0: i32) -> (i32, i32) {
    %c0_i32 = arith.constant 0 : i32
    %c0_i32_0 = arith.constant 0 : i32
    return %c0_i32, %arg0 : i32, i32
  }
}

</mosaic_0001>

<llo_original>
// kernel: tpu_custom_call.1
$region0: #{tpu_custom_call.1}
  #allocation0 [shape = 'u32[]', space=smem, size = 0x4, offset = 0x4, fixed_abs, tag = 'smem constant byte address 0x4 - core index']
  #allocation1 [shape = 'u32[144,128]{1,0:T(1,128)}', space=vmem, size = 0x12000, scoped, tag = 'internal scratch']
  #allocation2 [shape = 'f32[1]{0:T(128)S(6)}', space=smem, size = 0x200, scoped, tag = 'scoped memory for tpu_custom_call.1']
  %s0 = inlined_call_operand.vmem [shape: bf16[128,128], index: 0, kind: input, shape index: {}]
  %s1 = inlined_call_operand.hbm [shape: bf16[128,128], index: 1, kind: input, shape index: {}]
  %s2 = inlined_call_operand.hbm [shape: bf16[32,64], index: 2, kind: input, shape index: {}]
  %s3 = inlined_call_operand.vmem [shape: f32[32,1], index: 3, kind: input, shape index: {}]
  %s4 = inlined_call_operand.vmem [shape: f32[32,1], index: 4, kind: input, shape index: {}]
  %s5 = inlined_call_operand.<no memory space> [shape: f32[1], index: 5, kind: input, shape index: {}]
  %s6 = inlined_call_operand.hbm [shape: f32[1,128], index: 6, kind: output, shape index: {}]
  %s7 = sld [smem:[#allocation0]]
  $region42: #{tpu_custom_call.1} parent=0
    _
  %s9 = ssub.s32 1, %s7
  %s10 = scalar_select 0, %s9, %s7
  %11 = sst [smem:[#allocation2]] %s5
  $region1: #{tpu_custom_call.1} parent=0
    #allocation3 [shape = 'u8[32768]{0}', space=vmem, size = 0x8000, scoped, tag = 'input window, operand 1, single buffered']
    #allocation4 [shape = 's32[1]{0}', space=sflag, size = 0x4, scoped, tag = 'scoped memory for tpu_custom_call.1']
    #allocation5 [shape = 's32[1]{0}', space=sflag, size = 0x4, scoped, tag = 'scoped memory for tpu_custom_call.1']
    #allocation6 [shape = 'u8[8192]{0}', space=vmem, size = 0x2000, scoped, tag = 'input window, operand 2, single buffered']
    #allocation7 [shape = 's32[1]{0}', space=sflag, size = 0x4, scoped, tag = 'scoped memory for tpu_custom_call.1']
    #allocation8 [shape = 'u8[512]{0}', space=vmem, size = 0x400, scoped, tag = 'output window, operand 0, single buffered']
    %12 = vsyncpa [#allocation4], 0
    %13 = vsyncpa [#allocation7], 0
    %14 = vsyncpa [#allocation5], 0
    // Predicated region
    $region2: #{tpu_custom_call.1} parent=1 // pred_check
      _
    $region3: #{tpu_custom_call.1} parent=1 // pred_check_branch
      %16 = sbr.rel (0) target = $region5
    $region4: #{tpu_custom_call.1} parent=1 // pred_region
      _
    $region5: #{tpu_custom_call.1} parent=1 // pred_fallthru
      _
    // Predicated region
    $region6: #{tpu_custom_call.1} parent=1 // pred_check
      _
    $region7: #{tpu_custom_call.1} parent=1 // pred_check_branch
      %18 = sbr.rel (0) target = $region9
    $region8: #{tpu_custom_call.1} parent=1 // pred_region
      %s20 = ssub.s32 1024, 1024
      %21 = vsyncadd [#allocation4], %s20
      %s22 = sshll.u32 [#allocation3], 4
      %s23 = int_to_ptr.vmem [resolvable:$true] %s22
      %28 = dma.hbm_to_vmem [thread:$0]  %s1, 1024, %s23, [#allocation4], 64, 64, 4
    $region9: #{tpu_custom_call.1} parent=1 // pred_fallthru
      _
    // Predicated region
    $region10: #{tpu_custom_call.1} parent=1 // pred_check
      _
    $region11: #{tpu_custom_call.1} parent=1 // pred_check_branch
      %30 = sbr.rel (0) target = $region13
    $region12: #{tpu_custom_call.1} parent=1 // pred_region
      %s32 = ssub.s32 256, 256
      %33 = vsyncadd [#allocation7], %s32
      %s34 = sshll.u32 [#allocation6], 4
      %s35 = int_to_ptr.vmem [resolvable:$true] %s34
      %40 = dma.hbm_to_vmem [thread:$0]  %s2, 256, %s35, [#allocation7], 64, 64, 4
    $region13: #{tpu_custom_call.1} parent=1 // pred_fallthru
      _
    // Predicated region
    $region14: #{tpu_custom_call.1} parent=1 // pred_check
      _
    $region15: #{tpu_custom_call.1} parent=1 // pred_check_branch
      %42 = sbr.rel (0) target = $region17
    $region16: #{tpu_custom_call.1} parent=1 // pred_region
      _
    $region17: #{tpu_custom_call.1} parent=1 // pred_fallthru
      _
    // Predicated region
    $region18: #{tpu_custom_call.1} parent=1 // pred_check
      _
    $region19: #{tpu_custom_call.1} parent=1 // pred_check_branch
      %44 = sbr.rel (0) target = $region21
    $region20: #{tpu_custom_call.1} parent=1 // pred_region
      _
    $region21: #{tpu_custom_call.1} parent=1 // pred_fallthru
      _
    // Predicated region
    $region22: #{tpu_custom_call.1} parent=1 // pred_check
      _
    $region23: #{tpu_custom_call.1} parent=1 // pred_check_branch
      %46 = sbr.rel (0) target = $region25
    $region24: #{tpu_custom_call.1} parent=1 // pred_region
      _
    $region25: #{tpu_custom_call.1} parent=1 // pred_fallthru
      _
    // Predicated region
    $region26: #{tpu_custom_call.1} parent=1 // pred_check
      _
    $region27: #{tpu_custom_call.1} parent=1 // pred_check_branch
      %48 = sbr.rel (0) target = $region29
    $region28: #{tpu_custom_call.1} parent=1 // pred_region
      %49 = dma.done [#allocation4], 1024
    $region29: #{tpu_custom_call.1} parent=1 // pred_fallthru
      _
    // Predicated region
    $region30: #{tpu_custom_call.1} parent=1 // pred_check
      _
    $region31: #{tpu_custom_call.1} parent=1 // pred_check_branch
      %51 = sbr.rel (0) target = $region33
    $region32: #{tpu_custom_call.1} parent=1 // pred_region
      %52 = dma.done [#allocation7], 256
    $region33: #{tpu_custom_call.1} parent=1 // pred_fallthru
      _
    %v54 = vld [vmem:[%s0] sm:$0xf]
    %v55 = vld [vmem:[%s0 + $0x4] sm:$0xf]
    %v56 = vld [vmem:[%s0 + $0x8] sm:$0xf]
    %v57 = vld [vmem:[%s0 + $0xc] sm:$0xf]
    %v58 = vld [vmem:[%s0 + $0x10] sm:$0xf]
    %v59 = vld [vmem:[%s0 + $0x14] sm:$0xf]
    %v60 = vld [vmem:[%s0 + $0x18] sm:$0xf]
    %v61 = vld [vmem:[%s0 + $0x1c] sm:$0xf]
    %v62 = vld [vmem:[%s0 + $0x20] sm:$0xf]
    %v63 = vld [vmem:[%s0 + $0x24] sm:$0xf]
    %v64 = vld [vmem:[%s0 + $0x28] sm:$0xf]
    %v65 = vld [vmem:[%s0 + $0x2c] sm:$0xf]
    %v66 = vld [vmem:[%s0 + $0x30] sm:$0xf]
    %v67 = vld [vmem:[%s0 + $0x34] sm:$0xf]
    %v68 = vld [vmem:[%s0 + $0x38] sm:$0xf]
    %v69 = vld [vmem:[%s0 + $0x3c] sm:$0xf]
    %v70 = vld [vmem:[#allocation3] sm:$0xf]
    %v71 = vld [vmem:[#allocation3 + $0x4] sm:$0xf]
    %v72 = vld [vmem:[#allocation3 + $0x8] sm:$0xf]
    %v73 = vld [vmem:[#allocation3 + $0xc] sm:$0xf]
    %v74 = vld [vmem:[#allocation3 + $0x10] sm:$0xf]
    %v75 = vld [vmem:[#allocation3 + $0x14] sm:$0xf]
    %v76 = vld [vmem:[#allocation3 + $0x18] sm:$0xf]
    %v77 = vld [vmem:[#allocation3 + $0x1c] sm:$0xf]
    %v78 = vld [vmem:[#allocation3 + $0x20] sm:$0xf]
    %v79 = vld [vmem:[#allocation3 + $0x24] sm:$0xf]
    %v80 = vld [vmem:[#allocation3 + $0x28] sm:$0xf]
    %v81 = vld [vmem:[#allocation3 + $0x2c] sm:$0xf]
    %v82 = vld [vmem:[#allocation3 + $0x30] sm:$0xf]
    %v83 = vld [vmem:[#allocation3 + $0x34] sm:$0xf]
    %v84 = vld [vmem:[#allocation3 + $0x38] sm:$0xf]
    %v85 = vld [vmem:[#allocation3 + $0x3c] sm:$0xf]
    %v102 = vunpack.c.l.b16 %v70
    %v103 = vunpack.c.l.b16 %v71
    %v104 = vunpack.c.l.b16 %v72
    %v105 = vunpack.c.l.b16 %v73
    %v106 = vunpack.c.l.b16 %v74
    %v107 = vunpack.c.l.b16 %v75
    %v108 = vunpack.c.l.b16 %v76
    %v109 = vunpack.c.l.b16 %v77
    %v110 = vunpack.c.l.b16 %v78
    %v111 = vunpack.c.l.b16 %v79
    %v112 = vunpack.c.l.b16 %v80
    %v113 = vunpack.c.l.b16 %v81
    %v114 = vunpack.c.l.b16 %v82
    %v115 = vunpack.c.l.b16 %v83
    %v116 = vunpack.c.l.b16 %v84
    %v117 = vunpack.c.l.b16 %v85
    %v118 = vpack.c.b16 %v103, %v102
    %v119 = vpack.c.b16 %v105, %v104
    %v120 = vpack.c.b16 %v107, %v106
    %v121 = vpack.c.b16 %v109, %v108
    %v122 = vpack.c.b16 %v111, %v110
    %v123 = vpack.c.b16 %v113, %v112
    %v124 = vpack.c.b16 %v115, %v114
    %v125 = vpack.c.b16 %v117, %v116
    %v150 = vunpack.c.l.b16 %v54
    %v151 = vunpack.c.l.b16 %v55
    %v152 = vunpack.c.l.b16 %v56
    %v153 = vunpack.c.l.b16 %v57
    %v154 = vunpack.c.l.b16 %v58
    %v155 = vunpack.c.l.b16 %v59
    %v156 = vunpack.c.l.b16 %v60
    %v157 = vunpack.c.l.b16 %v61
    %v158 = vunpack.c.l.b16 %v62
    %v159 = vunpack.c.l.b16 %v63
    %v160 = vunpack.c.l.b16 %v64
    %v161 = vunpack.c.l.b16 %v65
    %v162 = vunpack.c.l.b16 %v66
    %v163 = vunpack.c.l.b16 %v67
    %v164 = vunpack.c.l.b16 %v68
    %v165 = vunpack.c.l.b16 %v69
    %v166 = vpack.c.b16 %v151, %v150
    %v167 = vpack.c.b16 %v153, %v152
    %v168 = vpack.c.b16 %v155, %v154
    %v169 = vpack.c.b16 %v157, %v156
    %v170 = vpack.c.b16 %v159, %v158
    %v171 = vpack.c.b16 %v161, %v160
    %v172 = vpack.c.b16 %v163, %v162
    %v173 = vpack.c.b16 %v165, %v164
    %182 = vmatprep.subr.bf16.mxu0 0
    %183 = vmatpush1.bf16.msra.mxu0 %v166
    %184 = vmatprep.subr.bf16.mxu0 0
    %185 = vmatpush1.bf16.msra.mxu0 %v167
    %186 = vmatprep.subr.bf16.mxu0 0
    %187 = vmatpush1.bf16.msra.mxu0 %v168
    %188 = vmatprep.subr.bf16.mxu0 0
    %189 = vmatpush1.bf16.msra.mxu0 %v169
    %190 = vmatprep.subr.bf16.mxu0 0
    %191 = vmatpush1.bf16.msra.mxu0 %v170
    %192 = vmatprep.subr.bf16.mxu0 0
    %193 = vmatpush1.bf16.msra.mxu0 %v171
    %194 = vmatprep.subr.bf16.mxu0 0
    %195 = vmatpush1.bf16.msra.mxu0 %v172
    %196 = vmatprep.subr.bf16.mxu0 0
    %197 = vmatpush1.bf16.msra.mxu0 %v173
    %198 = vmatprep.subr.bf16.mxu0 0
    %199 = vmatpush1.bf16.msra.mxu0 0
    %200 = vmatprep.subr.bf16.mxu0 0
    %201 = vmatpush1.bf16.msra.mxu0 0
    %202 = vmatprep.subr.bf16.mxu0 0
    %203 = vmatpush1.bf16.msra.mxu0 0
    %204 = vmatprep.subr.bf16.mxu0 0
    %205 = vmatpush1.bf16.msra.mxu0 0
    %206 = vmatprep.subr.bf16.mxu0 0
    %207 = vmatpush1.bf16.msra.mxu0 0
    %208 = vmatprep.subr.bf16.mxu0 0
    %209 = vmatpush1.bf16.msra.mxu0 0
    %210 = vmatprep.subr.bf16.mxu0 0
    %211 = vmatpush1.bf16.msra.mxu0 0
    %212 = vmatprep.subr.bf16.mxu0 0
    %213 = vmatpush1.bf16.msra.mxu0 0
    %214 = vmatprep.mubr.bf16.mxu0 0
    %215 = vmatmul.mubr.bf16.gmra.mrb[0].mxu0 %v118
    %v216 = vpop.f32.mrb[0].mxu0
    %v217 = vadd.f32 0.0, %v216
    %v218 = vpop.f32.mrb[0].mxu0
    %v219 = vpop.f32.mrb[0].mxu0
    %v220 = vadd.f32 0.0, %v219
    %v221 = vpop.f32.mrb[0].mxu0
    %222 = vmatprep.mubr.bf16.mxu0 0
    %223 = vmatmul.mubr.bf16.gmra.mrb[0].mxu0 %v119
    %v224 = vpop.f32.mrb[0].mxu0
    %v225 = vadd.f32 0.0, %v224
    %v226 = vpop.f32.mrb[0].mxu0
    %v227 = vpop.f32.mrb[0].mxu0
    %v228 = vadd.f32 0.0, %v227
    %v229 = vpop.f32.mrb[0].mxu0
    %230 = vmatprep.mubr.bf16.mxu0 0
    %231 = vmatmul.mubr.bf16.gmra.mrb[0].mxu0 %v120
    %v232 = vpop.f32.mrb[0].mxu0
    %v233 = vadd.f32 0.0, %v232
    %v234 = vpop.f32.mrb[0].mxu0
    %v235 = vpop.f32.mrb[0].mxu0
    %v236 = vadd.f32 0.0, %v235
    %v237 = vpop.f32.mrb[0].mxu0
    %238 = vmatprep.mubr.bf16.mxu0 0
    %239 = vmatmul.mubr.bf16.gmra.mrb[0].mxu0 %v121
    %v240 = vpop.f32.mrb[0].mxu0
    %v241 = vadd.f32 0.0, %v240
    %v242 = vpop.f32.mrb[0].mxu0
    %v243 = vpop.f32.mrb[0].mxu0
    %v244 = vadd.f32 0.0, %v243
    %v245 = vpop.f32.mrb[0].mxu0
    %246 = vmatprep.mubr.bf16.mxu0 0
    %247 = vmatmul.mubr.bf16.gmra.mrb[0].mxu0 %v122
    %v248 = vpop.f32.mrb[0].mxu0
    %v249 = vadd.f32 0.0, %v248
    %v250 = vpop.f32.mrb[0].mxu0
    %v251 = vpop.f32.mrb[0].mxu0
    %v252 = vadd.f32 0.0, %v251
    %v253 = vpop.f32.mrb[0].mxu0
    %254 = vmatprep.mubr.bf16.mxu0 0
    %255 = vmatmul.mubr.bf16.gmra.mrb[0].mxu0 %v123
    %v256 = vpop.f32.mrb[0].mxu0
    %v257 = vadd.f32 0.0, %v256
    %v258 = vpop.f32.mrb[0].mxu0
    %v259 = vpop.f32.mrb[0].mxu0
    %v260 = vadd.f32 0.0, %v259
    %v261 = vpop.f32.mrb[0].mxu0
    %262 = vmatprep.mubr.bf16.mxu0 0
    %263 = vmatmul.mubr.bf16.gmra.mrb[0].mxu0 %v124
    %v264 = vpop.f32.mrb[0].mxu0
    %v265 = vadd.f32 0.0, %v264
    %v266 = vpop.f32.mrb[0].mxu0
    %v267 = vpop.f32.mrb[0].mxu0
    %v268 = vadd.f32 0.0, %v267
    %v269 = vpop.f32.mrb[0].mxu0
    %270 = vmatprep.mubr.bf16.mxu0 0
    %271 = vmatmul.mubr.bf16.gmra.mrb[0].mxu0 %v125
    %v272 = vpop.f32.mrb[0].mxu0
    %v273 = vadd.f32 0.0, %v272
    %v274 = vpop.f32.mrb[0].mxu0
    %v275 = vpop.f32.mrb[0].mxu0
    %v276 = vadd.f32 0.0, %v275
    %v277 = vpop.f32.mrb[0].mxu0
    %278 = vdwg.mxu0
    %v279 = vmul.f32 %v217, %v217
    %v280 = vmul.f32 %v220, %v220
    %v281 = vmul.f32 %v225, %v225
    %v282 = vmul.f32 %v228, %v228
    %v283 = vmul.f32 %v233, %v233
    %v284 = vmul.f32 %v236, %v236
    %v285 = vmul.f32 %v241, %v241
    %v286 = vmul.f32 %v244, %v244
    %v287 = vmul.f32 %v249, %v249
    %v288 = vmul.f32 %v252, %v252
    %v289 = vmul.f32 %v257, %v257
    %v290 = vmul.f32 %v260, %v260
    %v291 = vmul.f32 %v265, %v265
    %v292 = vmul.f32 %v268, %v268
    %v293 = vmul.f32 %v273, %v273
    %v294 = vmul.f32 %v276, %v276
    %v295 = vadd.f32 %v279, %v287
    %v296 = vadd.f32 %v280, %v288
    %v297 = vadd.f32 %v281, %v289
    %v298 = vadd.f32 %v282, %v290
    %v299 = vadd.f32 %v283, %v291
    %v300 = vadd.f32 %v284, %v292
    %v301 = vadd.f32 %v285, %v293
    %v302 = vadd.f32 %v286, %v294
    %v303 = vadd.f32 %v295, 1e-06
    %v304 = vadd.f32 %v296, 1e-06
    %v305 = vadd.f32 %v297, 1e-06
    %v306 = vadd.f32 %v298, 1e-06
    %v307 = vadd.f32 %v299, 1e-06
    %v308 = vadd.f32 %v300, 1e-06
    %v309 = vadd.f32 %v301, 1e-06
    %v310 = vadd.f32 %v302, 1e-06
    %v311 = vlog2.pop %v303
    %v312 = vmul.f32 %v311, 0.6931472
    %v313 = vlog2.pop %v304
    %v314 = vmul.f32 %v313, 0.6931472
    %v315 = vlog2.pop %v305
    %v316 = vmul.f32 %v315, 0.6931472
    %v317 = vlog2.pop %v306
    %v318 = vmul.f32 %v317, 0.6931472
    %v319 = vlog2.pop %v307
    %v320 = vmul.f32 %v319, 0.6931472
    %v321 = vlog2.pop %v308
    %v322 = vmul.f32 %v321, 0.6931472
    %v323 = vlog2.pop %v309
    %v324 = vmul.f32 %v323, 0.6931472
    %v325 = vlog2.pop %v310
    %v326 = vmul.f32 %v325, 0.6931472
    %v327 = vld [vmem:[#allocation6] sm:$0xf]
    %v328 = vld [vmem:[#allocation6 + $0x4] sm:$0xf]
    %v329 = vld [vmem:[#allocation6 + $0x8] sm:$0xf]
    %v330 = vld [vmem:[#allocation6 + $0xc] sm:$0xf]
    %v331 = vpack.c.bf16 %v314, %v312
    %v332 = vpack.c.bf16 %v318, %v316
    %v333 = vpack.c.bf16 %v322, %v320
    %v334 = vpack.c.bf16 %v326, %v324
    %v335 = vld [vmem:[%s3] sm:$0xff]
    %v336 = vld [vmem:[%s3 + $0x8] sm:$0xff]
    %v337 = vld [vmem:[%s3 + $0x10] sm:$0xff]
    %v338 = vld [vmem:[%s3 + $0x18] sm:$0xff]
    %340 = vset.pattern.permute.xlu0 0
    %341 = vperm.xlu0 %340, %v335
    %v342 = vpop.permute.xlu0 %341
    %345 = vset.pattern.permute.xlu0 0
    %346 = vperm.xlu0 %345, %v336
    %v347 = vpop.permute.xlu0 %346
    %350 = vset.pattern.permute.xlu0 0
    %351 = vperm.xlu0 %350, %v337
    %v352 = vpop.permute.xlu0 %351
    %355 = vset.pattern.permute.xlu0 0
    %356 = vperm.xlu0 %355, %v338
    %v357 = vpop.permute.xlu0 %356
    %v363 = vunpack.c.l.b16 %v327
    %v364 = vunpack.c.l.b16 %v328
    %v365 = vunpack.c.l.b16 %v329
    %v366 = vunpack.c.l.b16 %v330
    %v367 = vpack.c.b16 %v364, %v363
    %v368 = vpack.c.b16 %v366, %v365
    %vm369 = vcmask 523264
    %v371 = vsel %vm369, %v367, 0
    %v374 = vsel %vm369, %v368, 0
    %376 = vmatprep.subr.bf16.mxu0 0
    %377 = vmatpush1.bf16.msra.mxu0 %v331
    %378 = vmatprep.subr.bf16.mxu0 0
    %379 = vmatpush1.bf16.msra.mxu0 %v332
    %380 = vmatprep.subr.bf16.mxu0 0
    %381 = vmatpush1.bf16.msra.mxu0 %v333
    %382 = vmatprep.subr.bf16.mxu0 0
    %383 = vmatpush1.bf16.msra.mxu0 %v334
    %384 = vmatprep.subr.bf16.mxu0 0
    %385 = vmatpush1.bf16.msra.mxu0 0
    %386 = vmatprep.subr.bf16.mxu0 0
    %387 = vmatpush1.bf16.msra.mxu0 0
    %388 = vmatprep.subr.bf16.mxu0 0
    %389 = vmatpush1.bf16.msra.mxu0 0
    %390 = vmatprep.subr.bf16.mxu0 0
    %391 = vmatpush1.bf16.msra.mxu0 0
    %392 = vmatprep.subr.bf16.mxu0 0
    %393 = vmatpush1.bf16.msra.mxu0 0
    %394 = vmatprep.subr.bf16.mxu0 0
    %395 = vmatpush1.bf16.msra.mxu0 0
    %396 = vmatprep.subr.bf16.mxu0 0
    %397 = vmatpush1.bf16.msra.mxu0 0
    %398 = vmatprep.subr.bf16.mxu0 0
    %399 = vmatpush1.bf16.msra.mxu0 0
    %400 = vmatprep.subr.bf16.mxu0 0
    %401 = vmatpush1.bf16.msra.mxu0 0
    %402 = vmatprep.subr.bf16.mxu0 0
    %403 = vmatpush1.bf16.msra.mxu0 0
    %404 = vmatprep.subr.bf16.mxu0 0
    %405 = vmatpush1.bf16.msra.mxu0 0
    %406 = vmatprep.subr.bf16.mxu0 0
    %407 = vmatpush1.bf16.msra.mxu0 0
    %408 = vmatprep.mubr.bf16.mxu0 0
    %409 = vmatmul.mubr.bf16.gmra.mrb[0].mxu0 %v371
    %v410 = vpop.f32.mrb[0].mxu0
    %v411 = vadd.f32 %v342, %v410
    %v412 = vpop.f32.mrb[0].mxu0
    %v413 = vpop.f32.mrb[0].mxu0
    %v414 = vadd.f32 %v347, %v413
    %v415 = vpop.f32.mrb[0].mxu0
    %416 = vmatprep.mubr.bf16.mxu0 0
    %417 = vmatmul.mubr.bf16.gmra.mrb[0].mxu0 %v374
    %v418 = vpop.f32.mrb[0].mxu0
    %v419 = vadd.f32 %v352, %v418
    %v420 = vpop.f32.mrb[0].mxu0
    %v421 = vpop.f32.mrb[0].mxu0
    %v422 = vadd.f32 %v357, %v421
    %v423 = vpop.f32.mrb[0].mxu0
    %424 = vdwg.mxu0
    %v425 = vmax.f32 %v411, 0.0
    %v426 = vmax.f32 %v414, 0.0
    %v427 = vmax.f32 %v419, 0.0
    %v428 = vmax.f32 %v422, 0.0
    %v429 = vld [vmem:[%s4] sm:$0xff]
    %v430 = vld [vmem:[%s4 + $0x8] sm:$0xff]
    %v431 = vld [vmem:[%s4 + $0x10] sm:$0xff]
    %v432 = vld [vmem:[%s4 + $0x18] sm:$0xff]
    %434 = vset.pattern.permute.xlu0 0
    %435 = vperm.xlu0 %434, %v429
    %v436 = vpop.permute.xlu0 %435
    %439 = vset.pattern.permute.xlu0 0
    %440 = vperm.xlu0 %439, %v430
    %v441 = vpop.permute.xlu0 %440
    %444 = vset.pattern.permute.xlu0 0
    %445 = vperm.xlu0 %444, %v431
    %v446 = vpop.permute.xlu0 %445
    %449 = vset.pattern.permute.xlu0 0
    %450 = vperm.xlu0 %449, %v432
    %v451 = vpop.permute.xlu0 %450
    %v453 = vmul.f32 %v425, %v436
    %v454 = vmul.f32 %v426, %v441
    %v455 = vmul.f32 %v427, %v446
    %v456 = vmul.f32 %v428, %v451
    %v457 = vadd.f32 %v453, %v454
    %v458 = vadd.f32 %v457, %v455
    %v459 = vadd.f32 %v458, %v456
    %v460 = vrot.slane %v459, 4
    %v461 = vadd.f32 %v459, %v460
    %v462 = vrot.slane %v461, 2
    %v463 = vadd.f32 %v461, %v462
    %v464 = vrot.slane %v463, 1
    %v465 = vadd.f32 %v463, %v464
    %s466 = sld [smem:[#allocation2]]
    %v467 = vstv %s466
    %v468 = vadd.f32 %v465, %v467
    %v469 = vxor.u32 %v468, 2147483648
    %v470 = vmul.f32 %v469, 1.442695
    %v471 = vpow.pop %v470
    %v472 = vadd.f32 %v471, 1.0
    %v473 = vrcp.pop %v472
    %v474 = vmul.f32 1.0, %v473
    %475 = vst [vmem:[#allocation8] sm:$0x1] %v474
    // Predicated region
    $region34: #{tpu_custom_call.1} parent=1 // pred_check
      _
    $region35: #{tpu_custom_call.1} parent=1 // pred_check_branch
      %477 = sbr.rel (0) target = $region37
    $region36: #{tpu_custom_call.1} parent=1 // pred_region
      %s479 = ssub.s32 16, 16
      %480 = vsyncadd [#allocation5], %s479
      %s482 = sshll.u32 [#allocation8], 4
      %s483 = int_to_ptr.vmem [resolvable:$true] %s482
      %485 = dma.vmem_to_hbm [thread:$0]  %s483, 16, %s6, [#allocation5]
    $region37: #{tpu_custom_call.1} parent=1 // pred_fallthru
      _
    // Predicated region
    $region38: #{tpu_custom_call.1} parent=1 // pred_check
      _
    $region39: #{tpu_custom_call.1} parent=1 // pred_check_branch
      %487 = sbr.rel (0) target = $region41
    $region40: #{tpu_custom_call.1} parent=1 // pred_region
      %488 = dma.done [#allocation5], 16
    $region41: #{tpu_custom_call.1} parent=1 // pred_fallthru
      _
    %489 = vsyncpa [#allocation4], 1
    %490 = vsyncpa [#allocation7], 1
    %491 = vsyncpa [#allocation5], 1

</llo_original>
